<compile_context>
chip_gen: v7x
topology: tpu7x:2x2x1
jax: 0.10.0
libtpu: 0.0.40
codegen_flags: <defaults>
</compile_context>

<pallas_src>
import functools

import jax
import jax.numpy as jnp
from jax.experimental import pallas as pl
from jax.experimental.pallas import tpu as pltpu


def _round_up(n, m):
    return ((n + m - 1) // m) * m


def _apply_order(layers):
    """(fan_in, fan_out) of every Linear in the order forward() applies them."""
    n = len(layers)
    enc = [(layers[i], layers[i + 1]) for i in range(n - 1)]
    dec = [(layers[j + 1], layers[j]) for j in range(n - 2, -1, -1)]
    return enc + dec


def _feat_pad(layers):
    # One uniform padded feature width for every activation / weight block.
    # Multiple of 16 keeps both f32 (8) and bf16 (16) sublane tiles aligned so
    # the static per-layer weight slices never cross a tile boundary.
    return _round_up(max(layers), 16)


def _make_kernel(layers, f_pad):
    n_lin = 2 * (len(layers) - 1)
    f32 = jnp.float32

    def kernel(x_ref, w_ref, b_ref, out_ref):
        # Feature-major activations: (f_pad sublanes, tb lanes), uniform shape
        # for all layers -> constant MXU cadence, no relayouts.
        h = x_ref[...]
        # NOTE: the module's decoder stack starts with an extra ReLU; it is
        # idempotent after the encoder's trailing ReLU, so it is dropped here.
        for k in range(n_lin):
            wk = w_ref[k * f_pad:(k + 1) * f_pad, :]        # (f_pad, f_pad) bf16
            bk = b_ref[:, k:k + 1]                          # (f_pad, 1)     f32
            acc = jnp.dot(wk, h.astype(jnp.bfloat16),
                          preferred_element_type=f32)       # lane-dense N = tb
            h = jnp.maximum(acc + bk, 0.0)                  # bias/ReLU in f32
        out_ref[...] = h.astype(out_ref.dtype)

    return kernel


def _pick_tb(batch, block_b):
    """Batch tile (lane axis): lane-dense, and >= 2 grid steps when it pays."""
    if batch < 256:
        return batch                      # single full block (tb == B is legal)
    tb = min(block_b, _round_up(pl.cdiv(batch, 2), 128))   # >=2 steps -> megacore
    return _round_up(max(tb, 128), 128)


@functools.partial(jax.jit, static_argnames=("layers", "block_b"))
def dae_forward(x, w_blob, b_blob, *, layers, block_b=8192):
    B, L0 = x.shape
    assert L0 == layers[0]
    f_pad = w_blob.shape[1]

    # Feature-major input: batch on the 128-lane axis.  One transpose (and a
    # feature pad only if layers[0] is not already the padded width).
    x_fm = x.T
    if f_pad != L0:
        x_fm = jnp.pad(x_fm, ((0, f_pad - L0), (0, 0)))

    tb = _pick_tb(B, block_b)
    grid = (pl.cdiv(B, tb),)    # ragged last tile handled by Pallas (no batch pad)

    out_fm = pl.pallas_call(
        _make_kernel(layers, f_pad),
        grid=grid,
        in_specs=[
            pl.BlockSpec((f_pad, tb), lambda i: (0, i)),
            # Constant block index -> params stay VMEM-resident across steps.
            pl.BlockSpec(w_blob.shape, lambda i: (0, 0)),
            pl.BlockSpec(b_blob.shape, lambda i: (0, 0)),
        ],
        out_specs=pl.BlockSpec((f_pad, tb), lambda i: (0, i)),
        out_shape=jax.ShapeDtypeStruct((f_pad, B), jnp.float32),
        compiler_params=pltpu.CompilerParams(
            dimension_semantics=("parallel",)),
        # At block_b=8192 the double-buffered in+out footprint is ~4 MiB, well
        # under every generation's default scoped VMEM (16/32/32 MiB); raise
        # vmem_limit_bytes here only if block_b is pushed past ~32K rows.
    )(x_fm, w_blob, b_blob)

    return out_fm[:L0, :].T


# ----------------------------- parameters ---------------------------------


def make_params(key, layers):
    """PyTorch nn.Linear default init; weights stored PyTorch-style (out, in)."""
    shapes = _apply_order(layers)
    keys = jax.random.split(key, len(shapes))
    ws, bs = [], []
    for k, (fi, fo) in zip(keys, shapes):
        kw, kb = jax.random.split(k)
        bound = 1.0 / float(fi) ** 0.5
        ws.append(jax.random.uniform(kw, (fo, fi), jnp.float32, -bound, bound))
        bs.append(jax.random.uniform(kb, (fo,), jnp.float32, -bound, bound))
    return ws, bs


def pack_params(ws, bs, layers):
    """Pack all weights/biases into uniform padded, feature-major blobs."""
    shapes = _apply_order(layers)
    f_pad = _feat_pad(layers)
    n = len(shapes)
    w_blob = jnp.zeros((n * f_pad, f_pad), jnp.float32)
    b_blob = jnp.zeros((f_pad, n), jnp.float32)
    for k, ((fi, fo), w, b) in enumerate(zip(shapes, ws, bs)):
        w_blob = w_blob.at[k * f_pad:k * f_pad + fo, :fi].set(w)   # (fo, fi) block
        b_blob = b_blob.at[:fo, k].set(b)
    # bf16 weights: MXU-native operands; accumulation stays f32 in the kernel.
    return w_blob.astype(jnp.bfloat16), b_blob


# ----------------------------- reference -----------------------------------


def reference_forward(x, ws, bs, layers):
    relu = lambda v: jnp.maximum(v, 0.0)
    n_enc = len(layers) - 1
    h = x
    for k, (w, b) in enumerate(zip(ws, bs)):
        if k == n_enc:
            h = relu(h)          # decoder-leading ReLU of the module
        h = relu(h @ w.T + b)
    return h


# TODO(synk): the with_loc=True branch (first decoder Linear(layer, 48)) is not
# exercised by this spec's default construction and is not implemented.

if __name__ == "__main__":
    layers = (32, 24, 16)
    batch = 8

    root = jax.random.PRNGKey(0)
    k_param, k_x = jax.random.split(root)

    ws, bs = make_params(k_param, layers)
    w_blob, b_blob = pack_params(ws, bs, layers)
    x = jax.random.normal(k_x, (batch, layers[0]), jnp.float32)

    out = jax.block_until_ready(dae_forward(x, w_blob, b_blob, layers=layers))

    ref = reference_forward(x, ws, bs, layers)
    assert out.shape == (batch, layers[0])
    # bf16 matmul operands (f32 accumulation) -> loosened tolerance vs f32 ref.
    assert jnp.allclose(out, ref, rtol=3e-2, atol=3e-2)

    print("KERNEL_OK")
</pallas_src>

<mosaic_0001>
module attributes {stable_mosaic.version = 11 : i64} {
  func.func @kernel(%arg0: i32, %arg1: memref<32x8xf32, #tpu.memory_space<vmem>>, %arg2: memref<128x32xbf16, #tpu.memory_space<vmem>>, %arg3: memref<32x4xf32, #tpu.memory_space<vmem>>, %arg4: memref<32x8xf32, #tpu.memory_space<vmem>>) attributes {dimension_semantics = [#tpu.dimension_semantics<parallel>], iteration_bounds = array<i64: 1>, scalar_prefetch = 0 : i64, scratch_operands = 0 : i64, tpu.core_type = #tpu.core_type<tc>, window_params = [{transform_indices = @transform_0, window_bounds = array<i64: 32, 8>}, {pipeline_mode = #tpu.pipeline_mode<synchronous>, transform_indices = @transform_1, window_bounds = array<i64: 128, 32>}, {pipeline_mode = #tpu.pipeline_mode<synchronous>, transform_indices = @transform_2, window_bounds = array<i64: 32, 4>}, {transform_indices = @transform_3, window_bounds = array<i64: 32, 8>}]} {
    %c0 = arith.constant 0 : index
    %c0_0 = arith.constant 0 : index
    %0 = vector.load %arg1[%c0, %c0_0] : memref<32x8xf32, #tpu.memory_space<vmem>>, vector<32x8xf32>
    %c0_1 = arith.constant 0 : index
    %c0_2 = arith.constant 0 : index
    %1 = vector.load %arg2[%c0_1, %c0_2] : memref<128x32xbf16, #tpu.memory_space<vmem>>, vector<32x32xbf16>
    %c0_3 = arith.constant 0 : index
    %c0_4 = arith.constant 0 : index
    %2 = vector.load %arg3[%c0_3, %c0_4] : memref<32x4xf32, #tpu.memory_space<vmem>>, vector<32x1xf32>
    %3 = arith.truncf %0 : vector<32x8xf32> to vector<32x8xbf16>
    %cst = arith.constant dense<0.000000e+00> : vector<32x8xf32>
    %4 = tpu.matmul %1, %3, %cst {dimension_numbers = #tpu.dot_dimension_numbers<[1], [0], [0], [1], [0, 0, 1, 1], [], []>} : vector<32x32xbf16>, vector<32x8xbf16>, vector<32x8xf32> -> vector<32x8xf32>
    %5 = vector.broadcast %2 : vector<32x1xf32> to vector<32x8xf32>
    %6 = arith.addf %4, %5 : vector<32x8xf32>
    %cst_5 = arith.constant 0.000000e+00 : f32
    %7 = vector.broadcast %cst_5 : f32 to vector<32x8xf32>
    %8 = arith.maximumf %6, %7 : vector<32x8xf32>
    %c32 = arith.constant 32 : index
    %c0_6 = arith.constant 0 : index
    %9 = vector.load %arg2[%c32, %c0_6] : memref<128x32xbf16, #tpu.memory_space<vmem>>, vector<32x32xbf16>
    %c0_7 = arith.constant 0 : index
    %c1 = arith.constant 1 : index
    %10 = vector.load %arg3[%c0_7, %c1] : memref<32x4xf32, #tpu.memory_space<vmem>>, vector<32x1xf32>
    %11 = arith.truncf %8 : vector<32x8xf32> to vector<32x8xbf16>
    %cst_8 = arith.constant dense<0.000000e+00> : vector<32x8xf32>
    %12 = tpu.matmul %9, %11, %cst_8 {dimension_numbers = #tpu.dot_dimension_numbers<[1], [0], [0], [1], [0, 0, 1, 1], [], []>} : vector<32x32xbf16>, vector<32x8xbf16>, vector<32x8xf32> -> vector<32x8xf32>
    %13 = vector.broadcast %10 : vector<32x1xf32> to vector<32x8xf32>
    %14 = arith.addf %12, %13 : vector<32x8xf32>
    %cst_9 = arith.constant 0.000000e+00 : f32
    %15 = vector.broadcast %cst_9 : f32 to vector<32x8xf32>
    %16 = arith.maximumf %14, %15 : vector<32x8xf32>
    %c64 = arith.constant 64 : index
    %c0_10 = arith.constant 0 : index
    %17 = vector.load %arg2[%c64, %c0_10] : memref<128x32xbf16, #tpu.memory_space<vmem>>, vector<32x32xbf16>
    %c0_11 = arith.constant 0 : index
    %c2 = arith.constant 2 : index
    %18 = vector.load %arg3[%c0_11, %c2] : memref<32x4xf32, #tpu.memory_space<vmem>>, vector<32x1xf32>
    %19 = arith.truncf %16 : vector<32x8xf32> to vector<32x8xbf16>
    %cst_12 = arith.constant dense<0.000000e+00> : vector<32x8xf32>
    %20 = tpu.matmul %17, %19, %cst_12 {dimension_numbers = #tpu.dot_dimension_numbers<[1], [0], [0], [1], [0, 0, 1, 1], [], []>} : vector<32x32xbf16>, vector<32x8xbf16>, vector<32x8xf32> -> vector<32x8xf32>
    %21 = vector.broadcast %18 : vector<32x1xf32> to vector<32x8xf32>
    %22 = arith.addf %20, %21 : vector<32x8xf32>
    %cst_13 = arith.constant 0.000000e+00 : f32
    %23 = vector.broadcast %cst_13 : f32 to vector<32x8xf32>
    %24 = arith.maximumf %22, %23 : vector<32x8xf32>
    %c96 = arith.constant 96 : index
    %c0_14 = arith.constant 0 : index
    %25 = vector.load %arg2[%c96, %c0_14] : memref<128x32xbf16, #tpu.memory_space<vmem>>, vector<32x32xbf16>
    %c0_15 = arith.constant 0 : index
    %c3 = arith.constant 3 : index
    %26 = vector.load %arg3[%c0_15, %c3] : memref<32x4xf32, #tpu.memory_space<vmem>>, vector<32x1xf32>
    %27 = arith.truncf %24 : vector<32x8xf32> to vector<32x8xbf16>
    %cst_16 = arith.constant dense<0.000000e+00> : vector<32x8xf32>
    %28 = tpu.matmul %25, %27, %cst_16 {dimension_numbers = #tpu.dot_dimension_numbers<[1], [0], [0], [1], [0, 0, 1, 1], [], []>} : vector<32x32xbf16>, vector<32x8xbf16>, vector<32x8xf32> -> vector<32x8xf32>
    %29 = vector.broadcast %26 : vector<32x1xf32> to vector<32x8xf32>
    %30 = arith.addf %28, %29 : vector<32x8xf32>
    %cst_17 = arith.constant 0.000000e+00 : f32
    %31 = vector.broadcast %cst_17 : f32 to vector<32x8xf32>
    %32 = arith.maximumf %30, %31 : vector<32x8xf32>
    %c0_18 = arith.constant 0 : index
    %c0_19 = arith.constant 0 : index
    %33 = vector.load %arg4[%c0_18, %c0_19] : memref<32x8xf32, #tpu.memory_space<vmem>>, vector<32x8xf32>
    tpu.vector_store %arg4[%c0_18, %c0_19], %32 {strides = array<i32>} : memref<32x8xf32, #tpu.memory_space<vmem>>, vector<32x8xf32>,
    return
  }
  func.func @transform_0(%arg0: i32) -> (i32, i32) {
    %c0_i32 = arith.constant 0 : i32
    %c0_i32_0 = arith.constant 0 : i32
    return %c0_i32, %arg0 : i32, i32
  }
  func.func @transform_1(%arg0: i32) -> (i32, i32) {
    %c0_i32 = arith.constant 0 : i32
    %c0_i32_0 = arith.constant 0 : i32
    %c0_i32_1 = arith.constant 0 : i32
    return %c0_i32, %c0_i32_0 : i32, i32
  }
  func.func @transform_2(%arg0: i32) -> (i32, i32) {
    %c0_i32 = arith.constant 0 : i32
    %c0_i32_0 = arith.constant 0 : i32
    %c0_i32_1 = arith.constant 0 : i32
    return %c0_i32, %c0_i32_0 : i32, i32
  }
  func.func @transform_3(%arg0: i32) -> (i32, i32) {
    %c0_i32 = arith.constant 0 : i32
    %c0_i32_0 = arith.constant 0 : i32
    return %c0_i32, %arg0 : i32, i32
  }
}

</mosaic_0001>

<llo_original>
// kernel: dae_forward.1
$region0: #{dae_forward.1}
  #allocation0 [shape = 'u32[]', space=smem, size = 0x4, offset = 0x4, fixed_abs, tag = 'smem constant byte address 0x4 - core index']
  #allocation1 [shape = 'u32[144,128]{1,0:T(1,128)}', space=vmem, size = 0x12000, scoped, tag = 'internal scratch']
  %s0 = inlined_call_operand.vmem [shape: f32[32,8], index: 0, kind: input, shape index: {}]
  %s1 = inlined_call_operand.vmem [shape: bf16[128,32], index: 1, kind: input, shape index: {}]
  %s2 = inlined_call_operand.vmem [shape: f32[32,4], index: 2, kind: input, shape index: {}]
  %s3 = inlined_call_operand.vmem [shape: f32[32,8], index: 3, kind: output, shape index: {}]
  %s4 = sld [smem:[#allocation0]]
  $region22: #{dae_forward.1} parent=0
    _
  %s6 = ssub.s32 1, %s4
  %s7 = scalar_select 0, %s6, %s4
  // Predicated region
  $region2: #{dae_forward.1} parent=0 // pred_check
    _
  $region3: #{dae_forward.1} parent=0 // pred_check_branch
    %9 = sbr.rel (0) target = $region5
  $region4: #{dae_forward.1} parent=0 // pred_region
    _
  $region5: #{dae_forward.1} parent=0 // pred_fallthru
    _
  // Predicated region
  $region6: #{dae_forward.1} parent=0 // pred_check
    _
  $region7: #{dae_forward.1} parent=0 // pred_check_branch
    %11 = sbr.rel (0) target = $region9
  $region8: #{dae_forward.1} parent=0 // pred_region
    _
  $region9: #{dae_forward.1} parent=0 // pred_fallthru
    _
  // Predicated region
  $region10: #{dae_forward.1} parent=0 // pred_check
    _
  $region11: #{dae_forward.1} parent=0 // pred_check_branch
    %13 = sbr.rel (0) target = $region13
  $region12: #{dae_forward.1} parent=0 // pred_region
    _
  $region13: #{dae_forward.1} parent=0 // pred_fallthru
    _
  %v15 = vld [vmem:[%s0] sm:$0xff]
  %v16 = vld [vmem:[%s0 + $0x8] sm:$0xff]
  %v17 = vld [vmem:[%s0 + $0x10] sm:$0xff]
  %v18 = vld [vmem:[%s0 + $0x18] sm:$0xff]
  %v19 = vld [vmem:[%s1] sm:$0xf]
  %v20 = vld [vmem:[%s1 + $0x4] sm:$0xf]
  %v21 = vld [vmem:[%s1 + $0x8] sm:$0xf]
  %v22 = vld [vmem:[%s1 + $0xc] sm:$0xf]
  %v23 = vld [vmem:[%s2] sm:$0xff]
  %v24 = vld [vmem:[%s2 + $0x8] sm:$0xff]
  %v25 = vld [vmem:[%s2 + $0x10] sm:$0xff]
  %v26 = vld [vmem:[%s2 + $0x18] sm:$0xff]
  %v27 = vpack.c.bf16 %v16, %v15
  %v28 = vpack.c.bf16 %v18, %v17
  %30 = vset.pattern.permute.xlu0 0
  %31 = vperm.xlu0 %30, %v23
  %v32 = vpop.permute.xlu0 %31
  %35 = vset.pattern.permute.xlu0 0
  %36 = vperm.xlu0 %35, %v24
  %v37 = vpop.permute.xlu0 %36
  %40 = vset.pattern.permute.xlu0 0
  %41 = vperm.xlu0 %40, %v25
  %v42 = vpop.permute.xlu0 %41
  %45 = vset.pattern.permute.xlu0 0
  %46 = vperm.xlu0 %45, %v26
  %v47 = vpop.permute.xlu0 %46
  %v53 = vunpack.c.l.b16 %v19
  %v54 = vunpack.c.l.b16 %v20
  %v55 = vunpack.c.l.b16 %v21
  %v56 = vunpack.c.l.b16 %v22
  %v57 = vpack.c.b16 %v54, %v53
  %v58 = vpack.c.b16 %v56, %v55
  %vm59 = vcmask 261120
  %v61 = vsel %vm59, %v57, 0
  %v64 = vsel %vm59, %v58, 0
  %66 = vmatprep.subr.bf16.mxu0 0
  %67 = vmatpush1.bf16.msra.mxu0 %v27
  %68 = vmatprep.subr.bf16.mxu0 0
  %69 = vmatpush1.bf16.msra.mxu0 %v28
  %70 = vmatprep.subr.bf16.mxu0 0
  %71 = vmatpush1.bf16.msra.mxu0 0
  %72 = vmatprep.subr.bf16.mxu0 0
  %73 = vmatpush1.bf16.msra.mxu0 0
  %74 = vmatprep.subr.bf16.mxu0 0
  %75 = vmatpush1.bf16.msra.mxu0 0
  %76 = vmatprep.subr.bf16.mxu0 0
  %77 = vmatpush1.bf16.msra.mxu0 0
  %78 = vmatprep.subr.bf16.mxu0 0
  %79 = vmatpush1.bf16.msra.mxu0 0
  %80 = vmatprep.subr.bf16.mxu0 0
  %81 = vmatpush1.bf16.msra.mxu0 0
  %82 = vmatprep.subr.bf16.mxu0 0
  %83 = vmatpush1.bf16.msra.mxu0 0
  %84 = vmatprep.subr.bf16.mxu0 0
  %85 = vmatpush1.bf16.msra.mxu0 0
  %86 = vmatprep.subr.bf16.mxu0 0
  %87 = vmatpush1.bf16.msra.mxu0 0
  %88 = vmatprep.subr.bf16.mxu0 0
  %89 = vmatpush1.bf16.msra.mxu0 0
  %90 = vmatprep.subr.bf16.mxu0 0
  %91 = vmatpush1.bf16.msra.mxu0 0
  %92 = vmatprep.subr.bf16.mxu0 0
  %93 = vmatpush1.bf16.msra.mxu0 0
  %94 = vmatprep.subr.bf16.mxu0 0
  %95 = vmatpush1.bf16.msra.mxu0 0
  %96 = vmatprep.subr.bf16.mxu0 0
  %97 = vmatpush1.bf16.msra.mxu0 0
  %98 = vmatprep.mubr.bf16.mxu0 0
  %99 = vmatmul.mubr.bf16.gmra.mrb[0].mxu0 %v61
  %v100 = vpop.f32.mrb[0].mxu0
  %v101 = vadd.f32 %v32, %v100
  %v102 = vpop.f32.mrb[0].mxu0
  %v103 = vpop.f32.mrb[0].mxu0
  %v104 = vadd.f32 %v37, %v103
  %v105 = vpop.f32.mrb[0].mxu0
  %106 = vmatprep.mubr.bf16.mxu0 0
  %107 = vmatmul.mubr.bf16.gmra.mrb[0].mxu0 %v64
  %v108 = vpop.f32.mrb[0].mxu0
  %v109 = vadd.f32 %v42, %v108
  %v110 = vpop.f32.mrb[0].mxu0
  %v111 = vpop.f32.mrb[0].mxu0
  %v112 = vadd.f32 %v47, %v111
  %v113 = vpop.f32.mrb[0].mxu0
  %114 = vdwg.mxu0
  %v115 = vmax.f32 %v101, 0.0
  %v116 = vmax.f32 %v104, 0.0
  %v117 = vmax.f32 %v109, 0.0
  %v118 = vmax.f32 %v112, 0.0
  %v119 = vld [vmem:[%s1 + $0x10] sm:$0xf]
  %v120 = vld [vmem:[%s1 + $0x14] sm:$0xf]
  %v121 = vld [vmem:[%s1 + $0x18] sm:$0xf]
  %v122 = vld [vmem:[%s1 + $0x1c] sm:$0xf]
  %v123 = vpack.c.bf16 %v116, %v115
  %v124 = vpack.c.bf16 %v118, %v117
  %125 = vset.pattern.permute.xlu0 1
  %126 = vperm.xlu0 %125, %v23
  %v127 = vpop.permute.xlu0 %126
  %129 = vset.pattern.permute.xlu0 1
  %130 = vperm.xlu0 %129, %v24
  %v131 = vpop.permute.xlu0 %130
  %133 = vset.pattern.permute.xlu0 1
  %134 = vperm.xlu0 %133, %v25
  %v135 = vpop.permute.xlu0 %134
  %137 = vset.pattern.permute.xlu0 1
  %138 = vperm.xlu0 %137, %v26
  %v139 = vpop.permute.xlu0 %138
  %v145 = vunpack.c.l.b16 %v119
  %v146 = vunpack.c.l.b16 %v120
  %v147 = vunpack.c.l.b16 %v121
  %v148 = vunpack.c.l.b16 %v122
  %v149 = vpack.c.b16 %v146, %v145
  %v150 = vpack.c.b16 %v148, %v147
  %v152 = vsel %vm59, %v149, 0
  %v155 = vsel %vm59, %v150, 0
  %157 = vmatprep.subr.bf16.mxu0 0
  %158 = vmatpush1.bf16.msra.mxu0 %v123
  %159 = vmatprep.subr.bf16.mxu0 0
  %160 = vmatpush1.bf16.msra.mxu0 %v124
  %161 = vmatprep.subr.bf16.mxu0 0
  %162 = vmatpush1.bf16.msra.mxu0 0
  %163 = vmatprep.subr.bf16.mxu0 0
  %164 = vmatpush1.bf16.msra.mxu0 0
  %165 = vmatprep.subr.bf16.mxu0 0
  %166 = vmatpush1.bf16.msra.mxu0 0
  %167 = vmatprep.subr.bf16.mxu0 0
  %168 = vmatpush1.bf16.msra.mxu0 0
  %169 = vmatprep.subr.bf16.mxu0 0
  %170 = vmatpush1.bf16.msra.mxu0 0
  %171 = vmatprep.subr.bf16.mxu0 0
  %172 = vmatpush1.bf16.msra.mxu0 0
  %173 = vmatprep.subr.bf16.mxu0 0
  %174 = vmatpush1.bf16.msra.mxu0 0
  %175 = vmatprep.subr.bf16.mxu0 0
  %176 = vmatpush1.bf16.msra.mxu0 0
  %177 = vmatprep.subr.bf16.mxu0 0
  %178 = vmatpush1.bf16.msra.mxu0 0
  %179 = vmatprep.subr.bf16.mxu0 0
  %180 = vmatpush1.bf16.msra.mxu0 0
  %181 = vmatprep.subr.bf16.mxu0 0
  %182 = vmatpush1.bf16.msra.mxu0 0
  %183 = vmatprep.subr.bf16.mxu0 0
  %184 = vmatpush1.bf16.msra.mxu0 0
  %185 = vmatprep.subr.bf16.mxu0 0
  %186 = vmatpush1.bf16.msra.mxu0 0
  %187 = vmatprep.subr.bf16.mxu0 0
  %188 = vmatpush1.bf16.msra.mxu0 0
  %189 = vmatprep.mubr.bf16.mxu0 0
  %190 = vmatmul.mubr.bf16.gmra.mrb[0].mxu0 %v152
  %v191 = vpop.f32.mrb[0].mxu0
  %v192 = vadd.f32 %v127, %v191
  %v193 = vpop.f32.mrb[0].mxu0
  %v194 = vpop.f32.mrb[0].mxu0
  %v195 = vadd.f32 %v131, %v194
  %v196 = vpop.f32.mrb[0].mxu0
  %197 = vmatprep.mubr.bf16.mxu0 0
  %198 = vmatmul.mubr.bf16.gmra.mrb[0].mxu0 %v155
  %v199 = vpop.f32.mrb[0].mxu0
  %v200 = vadd.f32 %v135, %v199
  %v201 = vpop.f32.mrb[0].mxu0
  %v202 = vpop.f32.mrb[0].mxu0
  %v203 = vadd.f32 %v139, %v202
  %v204 = vpop.f32.mrb[0].mxu0
  %205 = vdwg.mxu0
  %v206 = vmax.f32 %v192, 0.0
  %v207 = vmax.f32 %v195, 0.0
  %v208 = vmax.f32 %v200, 0.0
  %v209 = vmax.f32 %v203, 0.0
  %v210 = vld [vmem:[%s1 + $0x20] sm:$0xf]
  %v211 = vld [vmem:[%s1 + $0x24] sm:$0xf]
  %v212 = vld [vmem:[%s1 + $0x28] sm:$0xf]
  %v213 = vld [vmem:[%s1 + $0x2c] sm:$0xf]
  %v214 = vpack.c.bf16 %v207, %v206
  %v215 = vpack.c.bf16 %v209, %v208
  %216 = vset.pattern.permute.xlu0 2
  %217 = vperm.xlu0 %216, %v23
  %v218 = vpop.permute.xlu0 %217
  %220 = vset.pattern.permute.xlu0 2
  %221 = vperm.xlu0 %220, %v24
  %v222 = vpop.permute.xlu0 %221
  %224 = vset.pattern.permute.xlu0 2
  %225 = vperm.xlu0 %224, %v25
  %v226 = vpop.permute.xlu0 %225
  %228 = vset.pattern.permute.xlu0 2
  %229 = vperm.xlu0 %228, %v26
  %v230 = vpop.permute.xlu0 %229
  %v236 = vunpack.c.l.b16 %v210
  %v237 = vunpack.c.l.b16 %v211
  %v238 = vunpack.c.l.b16 %v212
  %v239 = vunpack.c.l.b16 %v213
  %v240 = vpack.c.b16 %v237, %v236
  %v241 = vpack.c.b16 %v239, %v238
  %v243 = vsel %vm59, %v240, 0
  %v246 = vsel %vm59, %v241, 0
  %248 = vmatprep.subr.bf16.mxu0 0
  %249 = vmatpush1.bf16.msra.mxu0 %v214
  %250 = vmatprep.subr.bf16.mxu0 0
  %251 = vmatpush1.bf16.msra.mxu0 %v215
  %252 = vmatprep.subr.bf16.mxu0 0
  %253 = vmatpush1.bf16.msra.mxu0 0
  %254 = vmatprep.subr.bf16.mxu0 0
  %255 = vmatpush1.bf16.msra.mxu0 0
  %256 = vmatprep.subr.bf16.mxu0 0
  %257 = vmatpush1.bf16.msra.mxu0 0
  %258 = vmatprep.subr.bf16.mxu0 0
  %259 = vmatpush1.bf16.msra.mxu0 0
  %260 = vmatprep.subr.bf16.mxu0 0
  %261 = vmatpush1.bf16.msra.mxu0 0
  %262 = vmatprep.subr.bf16.mxu0 0
  %263 = vmatpush1.bf16.msra.mxu0 0
  %264 = vmatprep.subr.bf16.mxu0 0
  %265 = vmatpush1.bf16.msra.mxu0 0
  %266 = vmatprep.subr.bf16.mxu0 0
  %267 = vmatpush1.bf16.msra.mxu0 0
  %268 = vmatprep.subr.bf16.mxu0 0
  %269 = vmatpush1.bf16.msra.mxu0 0
  %270 = vmatprep.subr.bf16.mxu0 0
  %271 = vmatpush1.bf16.msra.mxu0 0
  %272 = vmatprep.subr.bf16.mxu0 0
  %273 = vmatpush1.bf16.msra.mxu0 0
  %274 = vmatprep.subr.bf16.mxu0 0
  %275 = vmatpush1.bf16.msra.mxu0 0
  %276 = vmatprep.subr.bf16.mxu0 0
  %277 = vmatpush1.bf16.msra.mxu0 0
  %278 = vmatprep.subr.bf16.mxu0 0
  %279 = vmatpush1.bf16.msra.mxu0 0
  %280 = vmatprep.mubr.bf16.mxu0 0
  %281 = vmatmul.mubr.bf16.gmra.mrb[0].mxu0 %v243
  %v282 = vpop.f32.mrb[0].mxu0
  %v283 = vadd.f32 %v218, %v282
  %v284 = vpop.f32.mrb[0].mxu0
  %v285 = vpop.f32.mrb[0].mxu0
  %v286 = vadd.f32 %v222, %v285
  %v287 = vpop.f32.mrb[0].mxu0
  %288 = vmatprep.mubr.bf16.mxu0 0
  %289 = vmatmul.mubr.bf16.gmra.mrb[0].mxu0 %v246
  %v290 = vpop.f32.mrb[0].mxu0
  %v291 = vadd.f32 %v226, %v290
  %v292 = vpop.f32.mrb[0].mxu0
  %v293 = vpop.f32.mrb[0].mxu0
  %v294 = vadd.f32 %v230, %v293
  %v295 = vpop.f32.mrb[0].mxu0
  %296 = vdwg.mxu0
  %v297 = vmax.f32 %v283, 0.0
  %v298 = vmax.f32 %v286, 0.0
  %v299 = vmax.f32 %v291, 0.0
  %v300 = vmax.f32 %v294, 0.0
  %v301 = vld [vmem:[%s1 + $0x30] sm:$0xf]
  %v302 = vld [vmem:[%s1 + $0x34] sm:$0xf]
  %v303 = vld [vmem:[%s1 + $0x38] sm:$0xf]
  %v304 = vld [vmem:[%s1 + $0x3c] sm:$0xf]
  %v305 = vpack.c.bf16 %v298, %v297
  %v306 = vpack.c.bf16 %v300, %v299
  %307 = vset.pattern.permute.xlu0 3
  %308 = vperm.xlu0 %307, %v23
  %v309 = vpop.permute.xlu0 %308
  %311 = vset.pattern.permute.xlu0 3
  %312 = vperm.xlu0 %311, %v24
  %v313 = vpop.permute.xlu0 %312
  %315 = vset.pattern.permute.xlu0 3
  %316 = vperm.xlu0 %315, %v25
  %v317 = vpop.permute.xlu0 %316
  %319 = vset.pattern.permute.xlu0 3
  %320 = vperm.xlu0 %319, %v26
  %v321 = vpop.permute.xlu0 %320
  %v327 = vunpack.c.l.b16 %v301
  %v328 = vunpack.c.l.b16 %v302
  %v329 = vunpack.c.l.b16 %v303
  %v330 = vunpack.c.l.b16 %v304
  %v331 = vpack.c.b16 %v328, %v327
  %v332 = vpack.c.b16 %v330, %v329
  %v334 = vsel %vm59, %v331, 0
  %v337 = vsel %vm59, %v332, 0
  %339 = vmatprep.subr.bf16.mxu0 0
  %340 = vmatpush1.bf16.msra.mxu0 %v305
  %341 = vmatprep.subr.bf16.mxu0 0
  %342 = vmatpush1.bf16.msra.mxu0 %v306
  %343 = vmatprep.subr.bf16.mxu0 0
  %344 = vmatpush1.bf16.msra.mxu0 0
  %345 = vmatprep.subr.bf16.mxu0 0
  %346 = vmatpush1.bf16.msra.mxu0 0
  %347 = vmatprep.subr.bf16.mxu0 0
  %348 = vmatpush1.bf16.msra.mxu0 0
  %349 = vmatprep.subr.bf16.mxu0 0
  %350 = vmatpush1.bf16.msra.mxu0 0
  %351 = vmatprep.subr.bf16.mxu0 0
  %352 = vmatpush1.bf16.msra.mxu0 0
  %353 = vmatprep.subr.bf16.mxu0 0
  %354 = vmatpush1.bf16.msra.mxu0 0
  %355 = vmatprep.subr.bf16.mxu0 0
  %356 = vmatpush1.bf16.msra.mxu0 0
  %357 = vmatprep.subr.bf16.mxu0 0
  %358 = vmatpush1.bf16.msra.mxu0 0
  %359 = vmatprep.subr.bf16.mxu0 0
  %360 = vmatpush1.bf16.msra.mxu0 0
  %361 = vmatprep.subr.bf16.mxu0 0
  %362 = vmatpush1.bf16.msra.mxu0 0
  %363 = vmatprep.subr.bf16.mxu0 0
  %364 = vmatpush1.bf16.msra.mxu0 0
  %365 = vmatprep.subr.bf16.mxu0 0
  %366 = vmatpush1.bf16.msra.mxu0 0
  %367 = vmatprep.subr.bf16.mxu0 0
  %368 = vmatpush1.bf16.msra.mxu0 0
  %369 = vmatprep.subr.bf16.mxu0 0
  %370 = vmatpush1.bf16.msra.mxu0 0
  %371 = vmatprep.mubr.bf16.mxu0 0
  %372 = vmatmul.mubr.bf16.gmra.mrb[0].mxu0 %v334
  %v373 = vpop.f32.mrb[0].mxu0
  %v374 = vadd.f32 %v309, %v373
  %v375 = vpop.f32.mrb[0].mxu0
  %v376 = vpop.f32.mrb[0].mxu0
  %v377 = vadd.f32 %v313, %v376
  %v378 = vpop.f32.mrb[0].mxu0
  %379 = vmatprep.mubr.bf16.mxu0 0
  %380 = vmatmul.mubr.bf16.gmra.mrb[0].mxu0 %v337
  %v381 = vpop.f32.mrb[0].mxu0
  %v382 = vadd.f32 %v317, %v381
  %v383 = vpop.f32.mrb[0].mxu0
  %v384 = vpop.f32.mrb[0].mxu0
  %v385 = vadd.f32 %v321, %v384
  %v386 = vpop.f32.mrb[0].mxu0
  %387 = vdwg.mxu0
  %v388 = vmax.f32 %v374, 0.0
  %v389 = vmax.f32 %v377, 0.0
  %v390 = vmax.f32 %v382, 0.0
  %v391 = vmax.f32 %v385, 0.0
  %vm392 = vcmask 64512
  %393 = vst.msk [vmem:[%s3] sm:$0xff] %vm392, %v388
  %394 = vst.msk [vmem:[%s3 + $0x8] sm:$0xff] %vm392, %v389
  %395 = vst.msk [vmem:[%s3 + $0x10] sm:$0xff] %vm392, %v390
  %396 = vst.msk [vmem:[%s3 + $0x18] sm:$0xff] %vm392, %v391
  // Predicated region
  $region14: #{dae_forward.1} parent=0 // pred_check
    _
  $region15: #{dae_forward.1} parent=0 // pred_check_branch
    %398 = sbr.rel (0) target = $region17
  $region16: #{dae_forward.1} parent=0 // pred_region
    _
  $region17: #{dae_forward.1} parent=0 // pred_fallthru
    _
  // Predicated region
  $region18: #{dae_forward.1} parent=0 // pred_check
    _
  $region19: #{dae_forward.1} parent=0 // pred_check_branch
    %400 = sbr.rel (0) target = $region21
  $region20: #{dae_forward.1} parent=0 // pred_region
    _
  $region21: #{dae_forward.1} parent=0 // pred_fallthru
    _

</llo_original>
